<compile_context>
chip_gen: v5e
topology: v5e:2x2
jax: 0.10.0
libtpu: 0.0.40
codegen_flags: <defaults>
</compile_context>

<pallas_src>
import jax
import jax.numpy as jnp
from jax.experimental import pallas as pl
from jax.experimental.pallas import tpu as pltpu


def _round_up(a, b):
    return (a + b - 1) // b * b


def _ncm_kernel(x_ref, w1_ref, w2_ref, o_ref, h_ref):
    # fc1 + ReLU only once per row tile (innermost grid axis j == 0); the
    # hidden activation stays in a VMEM scratch in the compute dtype (bf16 by
    # default -> half the live intermediate, no f32 spill between the dots).
    @pl.when(pl.program_id(1) == 0)
    def _():
        h = jnp.dot(x_ref[...], w1_ref[...],
                    preferred_element_type=jnp.float32)
        h_ref[...] = jnp.maximum(h, 0.0).astype(h_ref.dtype)

    # fc2 column tile (MXU, f32 accumulation).
    y = jnp.dot(h_ref[...], w2_ref[...], preferred_element_type=jnp.float32)
    o_ref[...] = y.astype(o_ref.dtype)


def prepare_ncm_weights(fc1_weight, fc2_weight, *, compute_dtype=jnp.bfloat16):
    """One-time (model-load) weight preprocessing — NOT in the per-call path.

    fc1_weight : (D, K)  PyTorch nn.Linear layout (out_features, in_features)
    fc2_weight : (D, D)
    Returns (w1_p, w2_p, out_features):
      w1_p : (K, Dp)   transposed, cast, zero-padded to lane-dense Dp
      w2_p : (Dp, Dp)  transposed, cast, zero-padded
    Padding is numerically exact: padded hidden channels are 0 after ReLU and
    padded fc2 rows are 0, so they contribute nothing.
    """
    d, k = fc1_weight.shape
    assert fc2_weight.shape == (d, d), fc2_weight.shape
    dp = _round_up(d, 128)
    w1_p = jnp.pad(jnp.asarray(fc1_weight).T.astype(compute_dtype),
                   ((0, 0), (0, dp - d)))
    w2_p = jnp.pad(jnp.asarray(fc2_weight).T.astype(compute_dtype),
                   ((0, dp - d), (0, dp - d)))
    return w1_p, w2_p, d


def ncm_predictor_prepared(x, w1_p, w2_p, out_features, *, tm=512, tn_max=1024,
                           out_dtype=jnp.float32, num_tensorcores=1):
    """y = relu(x @ W1) @ W2 with pre-transposed / padded / cast weights.

    x    : (..., K)
    w1_p : (K, Dp), w2_p : (Dp, Dp)   from prepare_ncm_weights
    num_tensorcores : pass 2 on v7x to keep >= 2 M-grid steps for megacore.
    """
    *lead, k = x.shape
    kw, dp = w1_p.shape
    assert kw == k, (kw, k)
    assert w2_p.shape == (dp, dp), w2_p.shape
    d = out_features
    compute_dtype = w1_p.dtype

    m = 1
    for s in lead:
        m *= s
    m = max(m, 1)
    x2 = x.reshape(m, k).astype(compute_dtype)   # only per-call prep op

    # ---- M tiling: big tiles, no explicit row pad (ragged last block is
    # masked by Pallas; unwritten rows never reach HBM). -----------------
    m8 = _round_up(m, 8)
    if m8 > tm:
        tm_eff = tm
    elif num_tensorcores >= 2 and m8 >= 16:
        tm_eff = _round_up(pl.cdiv(m8, 2), 8)     # >= 2 steps only with 2 TCs
    else:
        tm_eff = m8                               # single step on v5e / v6e
    gm = pl.cdiv(m, tm_eff)

    # ---- N tiling of fc2 output columns (caps resident weight VMEM for
    # large embed_dim; multiple of 256 keeps the 2x256^2 MXU fully fed). --
    if dp <= tn_max:
        tn = dp
    elif dp % 512 == 0:
        tn = 512
    elif dp % 256 == 0:
        tn = 256
    else:
        tn = 128
    gn = dp // tn

    esize = jnp.dtype(compute_dtype).itemsize
    osize = jnp.dtype(out_dtype).itemsize
    w2_bufs = 1 if gn == 1 else 2
    vmem_needed = (2 * tm_eff * k * esize          # x tile (double buffered)
                   + 2 * k * dp * esize            # fc1 weight (headroom)
                   + w2_bufs * dp * tn * esize     # fc2 weight tile
                   + 2 * tm_eff * tn * osize       # output tile
                   + tm_eff * dp * esize)          # hidden scratch
    vmem_limit = min(max(int(vmem_needed * 1.5) + (4 << 20), 32 << 20), 64 << 20)

    cost = pl.CostEstimate(
        flops=2 * m * k * dp + 2 * m * dp * dp,
        transcendentals=0,
        bytes_accessed=(m * k * esize + k * dp * esize + dp * dp * esize
                        + m * dp * osize),
    )

    out_shape = jax.ShapeDtypeStruct((m, dp), out_dtype)

    def run(single_buffer_weights):
        if single_buffer_weights:
            w1_spec = pl.BlockSpec((k, dp), lambda i, j: (0, 0),
                                   pipeline_mode=pl.Buffered(1))
            if gn == 1:
                w2_spec = pl.BlockSpec((dp, tn), lambda i, j: (0, j),
                                       pipeline_mode=pl.Buffered(1))
            else:
                w2_spec = pl.BlockSpec((dp, tn), lambda i, j: (0, j))
        else:
            w1_spec = pl.BlockSpec((k, dp), lambda i, j: (0, 0))
            w2_spec = pl.BlockSpec((dp, tn), lambda i, j: (0, j))

        return pl.pallas_call(
            _ncm_kernel,
            grid=(gm, gn),
            in_specs=[
                pl.BlockSpec((tm_eff, k), lambda i, j: (i, 0)),   # x row tile
                w1_spec,                                          # fc1 weight
                w2_spec,                                          # fc2 col tile
            ],
            out_specs=pl.BlockSpec((tm_eff, tn), lambda i, j: (i, j)),
            out_shape=out_shape,
            scratch_shapes=[pltpu.VMEM((tm_eff, dp), compute_dtype)],
            compiler_params=pltpu.CompilerParams(
                dimension_semantics=("parallel", "arbitrary"),
                vmem_limit_bytes=vmem_limit,
            ),
            cost_estimate=cost,
        )(x2, w1_p, w2_p)

    try:
        out = run(True)
    except Exception:
        # Older jax without BlockSpec(pipeline_mode=...) / Buffered(1).
        out = run(False)

    if d != dp:
        out = out[:, :d]       # skipped entirely when D is a multiple of 128
    return out.reshape(*lead, d)


def ncm_predictor(x, fc1_weight, fc2_weight, *, compute_dtype=jnp.bfloat16,
                  **kwargs):
    """Convenience one-shot wrapper (prepares weights every call — prefer
    prepare_ncm_weights + ncm_predictor_prepared in real use)."""
    w1_p, w2_p, d = prepare_ncm_weights(fc1_weight, fc2_weight,
                                        compute_dtype=compute_dtype)
    return ncm_predictor_prepared(x, w1_p, w2_p, d, **kwargs)


if __name__ == "__main__":
    # Small shapes consistent with the module: batch=2, seq=8 tokens,
    # in_channels=32, embed_dim=8  ->  hidden = embed_dim**2 = 64.
    in_channels, embed_dim = 32, 8
    batch, seq = 2, 8
    hidden = embed_dim ** 2

    key = jax.random.PRNGKey(0)
    kx, k1, k2 = jax.random.split(key, 3)
    x = jax.random.normal(kx, (batch, seq, in_channels), jnp.float32)
    # PyTorch nn.Linear weight layout: (out_features, in_features), no bias.
    fc1_w = jax.random.normal(k1, (hidden, in_channels), jnp.float32) * (in_channels ** -0.5)
    fc2_w = jax.random.normal(k2, (hidden, hidden), jnp.float32) * (hidden ** -0.5)

    # One-time weight preparation, hoisted out of the per-call path.
    w1_p, w2_p, d = prepare_ncm_weights(fc1_w, fc2_w, compute_dtype=jnp.bfloat16)
    w1_p, w2_p = jax.block_until_ready((w1_p, w2_p))

    out = ncm_predictor_prepared(x, w1_p, w2_p, d)
    out = jax.block_until_ready(out)

    assert out.shape == (batch, seq, hidden), out.shape
    assert out.dtype == jnp.float32

    # Pure-JAX float32 reference; lenient tolerance for bf16 compute / f32 acc.
    ref = jnp.maximum(x @ fc1_w.T, 0.0) @ fc2_w.T
    err = jnp.max(jnp.abs(out - ref)) / (jnp.max(jnp.abs(ref)) + 1e-6)
    assert float(err) < 0.08, float(err)

    print("KERNEL_OK")
</pallas_src>

<mosaic_0001>
module attributes {stable_mosaic.version = 11 : i64} {
  func.func @_ncm_kernel(%arg0: i32, %arg1: i32, %arg2: memref<16x32xbf16, #tpu.memory_space<vmem>>, %arg3: memref<32x128xbf16, #tpu.memory_space<vmem>>, %arg4: memref<128x128xbf16, #tpu.memory_space<vmem>>, %arg5: memref<16x128xf32, #tpu.memory_space<vmem>>, %arg6: memref<16x128xbf16, #tpu.memory_space<vmem>>) attributes {dimension_semantics = [#tpu.dimension_semantics<parallel>, #tpu.dimension_semantics<arbitrary>], iteration_bounds = array<i64: 1, 1>, scalar_prefetch = 0 : i64, scratch_operands = 1 : i64, tpu.core_type = #tpu.core_type<tc>, window_params = [{transform_indices = @transform_0, window_bounds = array<i64: 16, 32>}, {pipeline_mode = #tpu.pipeline_mode<synchronous>, transform_indices = @transform_1, window_bounds = array<i64: 32, 128>}, {pipeline_mode = #tpu.pipeline_mode<synchronous>, transform_indices = @transform_2, window_bounds = array<i64: 128, 128>}, {transform_indices = @transform_3, window_bounds = array<i64: 16, 128>}]} {
    %c0_i32 = arith.constant 0 : i32
    %0 = arith.cmpi eq, %arg1, %c0_i32 : i32
    %1 = arith.extui %0 : i1 to i32
    %c0_i32_0 = arith.constant 0 : i32
    %2 = arith.cmpi ne, %1, %c0_i32_0 : i32
    scf.if %2 {
      %c0_6 = arith.constant 0 : index
      %c0_7 = arith.constant 0 : index
      %7 = vector.load %arg2[%c0_6, %c0_7] : memref<16x32xbf16, #tpu.memory_space<vmem>>, vector<16x32xbf16>
      %c0_8 = arith.constant 0 : index
      %c0_9 = arith.constant 0 : index
      %8 = vector.load %arg3[%c0_8, %c0_9] : memref<32x128xbf16, #tpu.memory_space<vmem>>, vector<32x128xbf16>
      %cst_10 = arith.constant dense<0.000000e+00> : vector<16x128xf32>
      %9 = tpu.matmul %7, %8, %cst_10 {dimension_numbers = #tpu.dot_dimension_numbers<[1], [0], [0], [1], [0, 0, 1, 1], [], []>} : vector<16x32xbf16>, vector<32x128xbf16>, vector<16x128xf32> -> vector<16x128xf32>
      %cst_11 = arith.constant 0.000000e+00 : f32
      %10 = vector.broadcast %cst_11 : f32 to vector<16x128xf32>
      %11 = arith.maximumf %9, %10 : vector<16x128xf32>
      %12 = arith.truncf %11 : vector<16x128xf32> to vector<16x128xbf16>
      %c0_12 = arith.constant 0 : index
      %c0_13 = arith.constant 0 : index
      %13 = vector.load %arg6[%c0_12, %c0_13] : memref<16x128xbf16, #tpu.memory_space<vmem>>, vector<16x128xbf16>
      tpu.vector_store %arg6[%c0_12, %c0_13], %12 {strides = array<i32>} : memref<16x128xbf16, #tpu.memory_space<vmem>>, vector<16x128xbf16>,
    } else {
    }
    %c0 = arith.constant 0 : index
    %c0_1 = arith.constant 0 : index
    %3 = vector.load %arg6[%c0, %c0_1] : memref<16x128xbf16, #tpu.memory_space<vmem>>, vector<16x128xbf16>
    %c0_2 = arith.constant 0 : index
    %c0_3 = arith.constant 0 : index
    %4 = vector.load %arg4[%c0_2, %c0_3] : memref<128x128xbf16, #tpu.memory_space<vmem>>, vector<128x128xbf16>
    %cst = arith.constant dense<0.000000e+00> : vector<16x128xf32>
    %5 = tpu.matmul %3, %4, %cst {dimension_numbers = #tpu.dot_dimension_numbers<[1], [0], [0], [1], [0, 0, 1, 1], [], []>} : vector<16x128xbf16>, vector<128x128xbf16>, vector<16x128xf32> -> vector<16x128xf32>
    %c0_4 = arith.constant 0 : index
    %c0_5 = arith.constant 0 : index
    %6 = vector.load %arg5[%c0_4, %c0_5] : memref<16x128xf32, #tpu.memory_space<vmem>>, vector<16x128xf32>
    tpu.vector_store %arg5[%c0_4, %c0_5], %5 {strides = array<i32>} : memref<16x128xf32, #tpu.memory_space<vmem>>, vector<16x128xf32>,
    return
  }
  func.func @transform_0(%arg0: i32, %arg1: i32) -> (i32, i32) {
    %c0_i32 = arith.constant 0 : i32
    %c0_i32_0 = arith.constant 0 : i32
    return %arg0, %c0_i32 : i32, i32
  }
  func.func @transform_1(%arg0: i32, %arg1: i32) -> (i32, i32) {
    %c0_i32 = arith.constant 0 : i32
    %c0_i32_0 = arith.constant 0 : i32
    %c0_i32_1 = arith.constant 0 : i32
    return %c0_i32, %c0_i32_0 : i32, i32
  }
  func.func @transform_2(%arg0: i32, %arg1: i32) -> (i32, i32) {
    %c0_i32 = arith.constant 0 : i32
    %c0_i32_0 = arith.constant 0 : i32
    return %c0_i32, %arg1 : i32, i32
  }
  func.func @transform_3(%arg0: i32, %arg1: i32) -> (i32, i32) {
    %c0_i32 = arith.constant 0 : i32
    return %arg0, %arg1 : i32, i32
  }
}

module attributes {stable_mosaic.version = 11 : i64} {
  func.func @_ncm_kernel(%arg0: i32, %arg1: i32, %arg2: memref<16x32xbf16, #tpu.memory_space<vmem>>, %arg3: memref<32x128xbf16, #tpu.memory_space<vmem>>, %arg4: memref<128x128xbf16, #tpu.memory_space<vmem>>, %arg5: memref<16x128xf32, #tpu.memory_space<vmem>>, %arg6: memref<16x128xbf16, #tpu.memory_space<vmem>>) attributes {dimension_semantics = [#tpu.dimension_semantics<parallel>, #tpu.dimension_semantics<arbitrary>], iteration_bounds = array<i64: 1, 1>, scalar_prefetch = 0 : i64, scratch_operands = 1 : i64, tpu.core_type = #tpu.core_type<tc>, window_params = [{transform_indices = @transform_0, window_bounds = array<i64: 16, 32>}, {pipeline_mode = #tpu.pipeline_mode<synchronous>, transform_indices = @transform_1, window_bounds = array<i64: 32, 128>}, {transform_indices = @transform_2, window_bounds = array<i64: 128, 128>}, {transform_indices = @transform_3, window_bounds = array<i64: 16, 128>}]} {
    %c0_i32 = arith.constant 0 : i32
    %0 = arith.cmpi eq, %arg1, %c0_i32 : i32
    %1 = arith.extui %0 : i1 to i32
    %c0_i32_0 = arith.constant 0 : i32
    %2 = arith.cmpi ne, %1, %c0_i32_0 : i32
    scf.if %2 {
      %c0_6 = arith.constant 0 : index
      %c0_7 = arith.constant 0 : index
      %7 = vector.load %arg2[%c0_6, %c0_7] : memref<16x32xbf16, #tpu.memory_space<vmem>>, vector<16x32xbf16>
      %c0_8 = arith.constant 0 : index
      %c0_9 = arith.constant 0 : index
      %8 = vector.load %arg3[%c0_8, %c0_9] : memref<32x128xbf16, #tpu.memory_space<vmem>>, vector<32x128xbf16>
      %cst_10 = arith.constant dense<0.000000e+00> : vector<16x128xf32>
      %9 = tpu.matmul %7, %8, %cst_10 {dimension_numbers = #tpu.dot_dimension_numbers<[1], [0], [0], [1], [0, 0, 1, 1], [], []>} : vector<16x32xbf16>, vector<32x128xbf16>, vector<16x128xf32> -> vector<16x128xf32>
      %cst_11 = arith.constant 0.000000e+00 : f32
      %10 = vector.broadcast %cst_11 : f32 to vector<16x128xf32>
      %11 = arith.maximumf %9, %10 : vector<16x128xf32>
      %12 = arith.truncf %11 : vector<16x128xf32> to vector<16x128xbf16>
      %c0_12 = arith.constant 0 : index
      %c0_13 = arith.constant 0 : index
      %13 = vector.load %arg6[%c0_12, %c0_13] : memref<16x128xbf16, #tpu.memory_space<vmem>>, vector<16x128xbf16>
      tpu.vector_store %arg6[%c0_12, %c0_13], %12 {strides = array<i32>} : memref<16x128xbf16, #tpu.memory_space<vmem>>, vector<16x128xbf16>,
    } else {
    }
    %c0 = arith.constant 0 : index
    %c0_1 = arith.constant 0 : index
    %3 = vector.load %arg6[%c0, %c0_1] : memref<16x128xbf16, #tpu.memory_space<vmem>>, vector<16x128xbf16>
    %c0_2 = arith.constant 0 : index
    %c0_3 = arith.constant 0 : index
    %4 = vector.load %arg4[%c0_2, %c0_3] : memref<128x128xbf16, #tpu.memory_space<vmem>>, vector<128x128xbf16>
    %cst = arith.constant dense<0.000000e+00> : vector<16x128xf32>
    %5 = tpu.matmul %3, %4, %cst {dimension_numbers = #tpu.dot_dimension_numbers<[1], [0], [0], [1], [0, 0, 1, 1], [], []>} : vector<16x128xbf16>, vector<128x128xbf16>, vector<16x128xf32> -> vector<16x128xf32>
    %c0_4 = arith.constant 0 : index
    %c0_5 = arith.constant 0 : index
    %6 = vector.load %arg5[%c0_4, %c0_5] : memref<16x128xf32, #tpu.memory_space<vmem>>, vector<16x128xf32>
    tpu.vector_store %arg5[%c0_4, %c0_5], %5 {strides = array<i32>} : memref<16x128xf32, #tpu.memory_space<vmem>>, vector<16x128xf32>,
    return
  }
  func.func @transform_0(%arg0: i32, %arg1: i32) -> (i32, i32) {
    %c0_i32 = arith.constant 0 : i32
    %c0_i32_0 = arith.constant 0 : i32
    return %arg0, %c0_i32 : i32, i32
  }
  func.func @transform_1(%arg0: i32, %arg1: i32) -> (i32, i32) {
    %c0_i32 = arith.constant 0 : i32
    %c0_i32_0 = arith.constant 0 : i32
    %c0_i32_1 = arith.constant 0 : i32
    return %c0_i32, %c0_i32_0 : i32, i32
  }
  func.func @transform_2(%arg0: i32, %arg1: i32) -> (i32, i32) {
    %c0_i32 = arith.constant 0 : i32
    %c0_i32_0 = arith.constant 0 : i32
    return %c0_i32, %arg1 : i32, i32
  }
  func.func @transform_3(%arg0: i32, %arg1: i32) -> (i32, i32) {
    %c0_i32 = arith.constant 0 : i32
    return %arg0, %arg1 : i32, i32
  }
}

</mosaic_0001>

<llo_original>
// kernel: tpu_custom_call.1
$region0: #{tpu_custom_call.1}
  #allocation0 [shape = 'u32[]', space=smem, size = 0x4, offset = 0x4, fixed_abs, tag = 'smem constant byte address 0x4 - core index']
  #allocation1 [shape = 'u32[72,128]{1,0:T(1,128)}', space=vmem, size = 0x9000, scoped, tag = 'internal scratch']
  #allocation2 [shape = 'bf16[16,128]{1,0:T(8,128)(2,1)}', space=vmem, size = 0x1000, scoped, tag = 'scratch operand']
  %s0 = inlined_call_operand.hbm [shape: bf16[16,32], index: 0, kind: input, shape index: {}]
  %s1 = inlined_call_operand.hbm [shape: bf16[32,128], index: 1, kind: input, shape index: {}]
  %s2 = inlined_call_operand.hbm [shape: bf16[128,128], index: 2, kind: input, shape index: {}]
  %s3 = inlined_call_operand.hbm [shape: f32[16,128], index: 3, kind: output, shape index: {}]
  %s4 = sld [smem:[#allocation0]]
  $region38: #{tpu_custom_call.1} parent=0
    _
  %s6 = ssub.s32 1, %s4
  %s7 = scalar_select 0, %s6, %s4
  $region1: #{tpu_custom_call.1} parent=0
    #allocation3 [shape = 'u8[4096]{0}', space=vmem, size = 0x1000, scoped, tag = 'input window, operand 0, single buffered']
    #allocation4 [shape = 's32[1]{0}', space=sflag, size = 0x4, scoped, tag = 'scoped memory for tpu_custom_call.1']
    #allocation5 [shape = 's32[1]{0}', space=sflag, size = 0x4, scoped, tag = 'scoped memory for tpu_custom_call.1']
    #allocation6 [shape = 'u8[8192]{0}', space=vmem, size = 0x2000, scoped, tag = 'input window, operand 1, single buffered']
    #allocation7 [shape = 's32[1]{0}', space=sflag, size = 0x4, scoped, tag = 'scoped memory for tpu_custom_call.1']
    #allocation8 [shape = 'u8[32768]{0}', space=vmem, size = 0x8000, scoped, tag = 'input window, operand 2, single buffered']
    #allocation9 [shape = 'u8[8192]{0}', space=vmem, size = 0x2000, scoped, tag = 'output window, operand 0, single buffered']
    %8 = vsyncpa [#allocation4], 0
    %9 = vsyncpa [#allocation7], 0
    %10 = vsyncpa [#allocation5], 0
    // Predicated region
    $region2: #{tpu_custom_call.1} parent=1 // pred_check
      _
    $region3: #{tpu_custom_call.1} parent=1 // pred_check_branch
      %12 = sbr.rel (0) target = $region5
    $region4: #{tpu_custom_call.1} parent=1 // pred_region
      %14 = vsyncadd [#allocation4], 0
      %s15 = sshll.u32 %s0, 4
      %s16 = int_to_ptr.hbm [resolvable:$true] %s15
      %s17 = sshll.u32 [#allocation3], 4
      %s18 = int_to_ptr.vmem [resolvable:$true] %s17
      %23 = dma.hbm_to_vmem [thread:$0]  %s16, 128, %s18, [#allocation4], 64, 64, 4
    $region5: #{tpu_custom_call.1} parent=1 // pred_fallthru
      _
    // Predicated region
    $region6: #{tpu_custom_call.1} parent=1 // pred_check
      _
    $region7: #{tpu_custom_call.1} parent=1 // pred_check_branch
      %25 = sbr.rel (0) target = $region9
    $region8: #{tpu_custom_call.1} parent=1 // pred_region
      %27 = vsyncadd [#allocation7], 0
      %s28 = sshll.u32 %s1, 4
      %s29 = int_to_ptr.hbm [resolvable:$true] %s28
      %s30 = sshll.u32 [#allocation6], 4
      %s31 = int_to_ptr.vmem [resolvable:$true] %s30
      %36 = dma.hbm_to_vmem [thread:$0]  %s29, 256, %s31, [#allocation7], 64, 64, 4
    $region9: #{tpu_custom_call.1} parent=1 // pred_fallthru
      _
    // Predicated region
    $region10: #{tpu_custom_call.1} parent=1 // pred_check
      _
    $region11: #{tpu_custom_call.1} parent=1 // pred_check_branch
      %38 = sbr.rel (0) target = $region13
    $region12: #{tpu_custom_call.1} parent=1 // pred_region
      %40 = vsyncadd [#allocation7], 0
      %s41 = sshll.u32 %s2, 4
      %s42 = int_to_ptr.hbm [resolvable:$true] %s41
      %s43 = sshll.u32 [#allocation8], 4
      %s44 = int_to_ptr.vmem [resolvable:$true] %s43
      %49 = dma.hbm_to_vmem [thread:$0]  %s42, 1024, %s44, [#allocation7], 64, 64, 4
    $region13: #{tpu_custom_call.1} parent=1 // pred_fallthru
      _
    // Predicated region
    $region14: #{tpu_custom_call.1} parent=1 // pred_check
      _
    $region15: #{tpu_custom_call.1} parent=1 // pred_check_branch
      %51 = sbr.rel (0) target = $region17
    $region16: #{tpu_custom_call.1} parent=1 // pred_region
      %53 = dma.done [#allocation4], 128
    $region17: #{tpu_custom_call.1} parent=1 // pred_fallthru
      _
    // Predicated region
    $region18: #{tpu_custom_call.1} parent=1 // pred_check
      _
    $region19: #{tpu_custom_call.1} parent=1 // pred_check_branch
      %55 = sbr.rel (0) target = $region21
    $region20: #{tpu_custom_call.1} parent=1 // pred_region
      %57 = dma.done [#allocation7], 256
    $region21: #{tpu_custom_call.1} parent=1 // pred_fallthru
      _
    // Predicated region
    $region22: #{tpu_custom_call.1} parent=1 // pred_check
      _
    $region23: #{tpu_custom_call.1} parent=1 // pred_check_branch
      %59 = sbr.rel (0) target = $region25
    $region24: #{tpu_custom_call.1} parent=1 // pred_region
      %61 = dma.done [#allocation7], 1024
    $region25: #{tpu_custom_call.1} parent=1 // pred_fallthru
      _
    %p63 = scmp.eq.s32.totalorder 0, 0
    // Predicated region
    $region26: #{tpu_custom_call.1} parent=1 // pred_check
      %p64 = pneg %p63
    $region27: #{tpu_custom_call.1} parent=1 // pred_check_branch
      %66 = sbr.rel (%p64) target = $region29
    $region28: #{tpu_custom_call.1} parent=1 // pred_region
      %v67 = vld [vmem:[#allocation3] sm:$0xf]
      %v68 = vld [vmem:[#allocation3 + $0x4] sm:$0xf]
      %v69 = vld [vmem:[#allocation6] sm:$0xf]
      %v70 = vld [vmem:[#allocation6 + $0x4] sm:$0xf]
      %v71 = vld [vmem:[#allocation6 + $0x8] sm:$0xf]
      %v72 = vld [vmem:[#allocation6 + $0xc] sm:$0xf]
      %v75 = vunpack.c.l.b16 %v67
      %v76 = vunpack.c.l.b16 %v68
      %v77 = vpack.c.b16 %v76, %v75
      %v82 = vunpack.c.l.b16 %v69
      %v83 = vunpack.c.l.b16 %v70
      %v84 = vunpack.c.l.b16 %v71
      %v85 = vunpack.c.l.b16 %v72
      %v86 = vpack.c.b16 %v83, %v82
      %v87 = vpack.c.b16 %v85, %v84
      %vm90 = vcmask 261120
      %v92 = vsel %vm90, %v77, 0
      %94 = vmatpush.bf16.msra.mxu0 0
      %95 = vmatpush.bf16.msra.mxu0 0
      %96 = vmatpush.bf16.msra.mxu0 0
      %97 = vmatpush.bf16.msra.mxu0 0
      %98 = vmatpush.bf16.msra.mxu0 0
      %99 = vmatpush.bf16.msra.mxu0 0
      %100 = vmatpush.bf16.msra.mxu0 %v87
      %101 = vmatpush.bf16.msra.mxu0 %v86
      %102 = vmatmul.bf16.gmra.mxu0 %v92
      %v103 = vpop.f32.mrf.mxu0
      %v104 = vadd.f32 0.0, %v103
      %v105 = vpop.f32.mrf.mxu0
      %v106 = vadd.f32 0.0, %v105
      %107 = vdwg.mxu0
      %v108 = vmax.f32 %v104, 0.0
      %v109 = vmax.f32 %v106, 0.0
      %v110 = vpack.c.bf16 %v108, %v108
      %v111 = vpack.c.bf16 %v109, %v109
      %112 = vst [vmem:[#allocation2] sm:$0xf] %v110
      %113 = vst [vmem:[#allocation2 + $0x4] sm:$0xf] %v111
    $region29: #{tpu_custom_call.1} parent=1 // pred_fallthru
      _
    %v114 = vld [vmem:[#allocation2] sm:$0xf]
    %v115 = vld [vmem:[#allocation2 + $0x4] sm:$0xf]
    %v116 = vld [vmem:[#allocation8] sm:$0xf]
    %v117 = vld [vmem:[#allocation8 + $0x4] sm:$0xf]
    %v118 = vld [vmem:[#allocation8 + $0x8] sm:$0xf]
    %v119 = vld [vmem:[#allocation8 + $0xc] sm:$0xf]
    %v120 = vld [vmem:[#allocation8 + $0x10] sm:$0xf]
    %v121 = vld [vmem:[#allocation8 + $0x14] sm:$0xf]
    %v122 = vld [vmem:[#allocation8 + $0x18] sm:$0xf]
    %v123 = vld [vmem:[#allocation8 + $0x1c] sm:$0xf]
    %v124 = vld [vmem:[#allocation8 + $0x20] sm:$0xf]
    %v125 = vld [vmem:[#allocation8 + $0x24] sm:$0xf]
    %v126 = vld [vmem:[#allocation8 + $0x28] sm:$0xf]
    %v127 = vld [vmem:[#allocation8 + $0x2c] sm:$0xf]
    %v128 = vld [vmem:[#allocation8 + $0x30] sm:$0xf]
    %v129 = vld [vmem:[#allocation8 + $0x34] sm:$0xf]
    %v130 = vld [vmem:[#allocation8 + $0x38] sm:$0xf]
    %v131 = vld [vmem:[#allocation8 + $0x3c] sm:$0xf]
    %v134 = vunpack.c.l.b16 %v114
    %v135 = vunpack.c.l.b16 %v115
    %v136 = vpack.c.b16 %v135, %v134
    %v154 = vunpack.c.l.b16 %v116
    %v155 = vunpack.c.l.b16 %v117
    %v156 = vunpack.c.l.b16 %v118
    %v157 = vunpack.c.l.b16 %v119
    %v158 = vunpack.c.l.b16 %v120
    %v159 = vunpack.c.l.b16 %v121
    %v160 = vunpack.c.l.b16 %v122
    %v161 = vunpack.c.l.b16 %v123
    %v162 = vunpack.c.l.b16 %v124
    %v163 = vunpack.c.l.b16 %v125
    %v164 = vunpack.c.l.b16 %v126
    %v165 = vunpack.c.l.b16 %v127
    %v166 = vunpack.c.l.b16 %v128
    %v167 = vunpack.c.l.b16 %v129
    %v168 = vunpack.c.l.b16 %v130
    %v169 = vunpack.c.l.b16 %v131
    %v170 = vpack.c.b16 %v155, %v154
    %v171 = vpack.c.b16 %v157, %v156
    %v172 = vpack.c.b16 %v159, %v158
    %v173 = vpack.c.b16 %v161, %v160
    %v174 = vpack.c.b16 %v163, %v162
    %v175 = vpack.c.b16 %v165, %v164
    %v176 = vpack.c.b16 %v167, %v166
    %v177 = vpack.c.b16 %v169, %v168
    %186 = vmatpush.bf16.msra.mxu0 %v177
    %187 = vmatpush.bf16.msra.mxu0 %v176
    %188 = vmatpush.bf16.msra.mxu0 %v175
    %189 = vmatpush.bf16.msra.mxu0 %v174
    %190 = vmatpush.bf16.msra.mxu0 %v173
    %191 = vmatpush.bf16.msra.mxu0 %v172
    %192 = vmatpush.bf16.msra.mxu0 %v171
    %193 = vmatpush.bf16.msra.mxu0 %v170
    %194 = vmatmul.bf16.gmra.mxu0 %v136
    %v195 = vpop.f32.mrf.mxu0
    %v196 = vadd.f32 0.0, %v195
    %v197 = vpop.f32.mrf.mxu0
    %v198 = vadd.f32 0.0, %v197
    %199 = vdwg.mxu0
    %200 = vst [vmem:[#allocation9] sm:$0xff] %v196
    %201 = vst [vmem:[#allocation9 + $0x8] sm:$0xff] %v198
    // Predicated region
    $region30: #{tpu_custom_call.1} parent=1 // pred_check
      _
    $region31: #{tpu_custom_call.1} parent=1 // pred_check_branch
      %203 = sbr.rel (0) target = $region33
    $region32: #{tpu_custom_call.1} parent=1 // pred_region
      %205 = vsyncadd [#allocation5], 0
      %s206 = sshll.u32 [#allocation9], 4
      %s207 = int_to_ptr.vmem [resolvable:$true] %s206
      %s208 = sshll.u32 %s3, 4
      %s209 = int_to_ptr.hbm [resolvable:$true] %s208
      %214 = dma.vmem_to_hbm [thread:$0]  %s207, 256, %s209, [#allocation5], 128, 128, 8
    $region33: #{tpu_custom_call.1} parent=1 // pred_fallthru
      _
    // Predicated region
    $region34: #{tpu_custom_call.1} parent=1 // pred_check
      _
    $region35: #{tpu_custom_call.1} parent=1 // pred_check_branch
      %216 = sbr.rel (0) target = $region37
    $region36: #{tpu_custom_call.1} parent=1 // pred_region
      %218 = dma.done [#allocation5], 256
    $region37: #{tpu_custom_call.1} parent=1 // pred_fallthru
      _
    %219 = vsyncpa [#allocation4], 1
    %220 = vsyncpa [#allocation7], 1
    %221 = vsyncpa [#allocation5], 1

// kernel: tpu_custom_call.1
$region0: #{tpu_custom_call.1}
  #allocation0 [shape = 'u32[]', space=smem, size = 0x4, offset = 0x4, fixed_abs, tag = 'smem constant byte address 0x4 - core index']
  #allocation1 [shape = 'u32[72,128]{1,0:T(1,128)}', space=vmem, size = 0x9000, scoped, tag = 'internal scratch']
  #allocation2 [shape = 'bf16[16,128]{1,0:T(8,128)(2,1)}', space=vmem, size = 0x1000, scoped, tag = 'scratch operand']
  %s0 = inlined_call_operand.hbm [shape: bf16[16,32], index: 0, kind: input, shape index: {}]
  %s1 = inlined_call_operand.hbm [shape: bf16[32,128], index: 1, kind: input, shape index: {}]
  %s2 = inlined_call_operand.hbm [shape: bf16[128,128], index: 2, kind: input, shape index: {}]
  %s3 = inlined_call_operand.hbm [shape: f32[16,128], index: 3, kind: output, shape index: {}]
  %s4 = sld [smem:[#allocation0]]
  $region38: #{tpu_custom_call.1} parent=0
    _
  %s6 = ssub.s32 1, %s4
  %s7 = scalar_select 0, %s6, %s4
  $region1: #{tpu_custom_call.1} parent=0
    #allocation3 [shape = 'u8[4096]{0}', space=vmem, size = 0x1000, scoped, tag = 'input window, operand 0, single buffered']
    #allocation4 [shape = 's32[1]{0}', space=sflag, size = 0x4, scoped, tag = 'scoped memory for tpu_custom_call.1']
    #allocation5 [shape = 's32[1]{0}', space=sflag, size = 0x4, scoped, tag = 'scoped memory for tpu_custom_call.1']
    #allocation6 [shape = 'u8[8192]{0}', space=vmem, size = 0x2000, scoped, tag = 'input window, operand 1, single buffered']
    #allocation7 [shape = 's32[1]{0}', space=sflag, size = 0x4, scoped, tag = 'scoped memory for tpu_custom_call.1']
    #allocation8 [shape = 'u8[32768]{0}', space=vmem, size = 0x8000, scoped, tag = 'input window, operand 2, single buffered']
    #allocation9 [shape = 'u8[8192]{0}', space=vmem, size = 0x2000, scoped, tag = 'output window, operand 0, single buffered']
    %8 = vsyncpa [#allocation4], 0
    %9 = vsyncpa [#allocation7], 0
    %10 = vsyncpa [#allocation5], 0
    // Predicated region
    $region2: #{tpu_custom_call.1} parent=1 // pred_check
      _
    $region3: #{tpu_custom_call.1} parent=1 // pred_check_branch
      %12 = sbr.rel (0) target = $region5
    $region4: #{tpu_custom_call.1} parent=1 // pred_region
      %14 = vsyncadd [#allocation4], 0
      %s15 = sshll.u32 %s0, 4
      %s16 = int_to_ptr.hbm [resolvable:$true] %s15
      %s17 = sshll.u32 [#allocation3], 4
      %s18 = int_to_ptr.vmem [resolvable:$true] %s17
      %23 = dma.hbm_to_vmem [thread:$0]  %s16, 128, %s18, [#allocation4], 64, 64, 4
    $region5: #{tpu_custom_call.1} parent=1 // pred_fallthru
      _
    // Predicated region
    $region6: #{tpu_custom_call.1} parent=1 // pred_check
      _
    $region7: #{tpu_custom_call.1} parent=1 // pred_check_branch
      %25 = sbr.rel (0) target = $region9
    $region8: #{tpu_custom_call.1} parent=1 // pred_region
      %27 = vsyncadd [#allocation7], 0
      %s28 = sshll.u32 %s1, 4
      %s29 = int_to_ptr.hbm [resolvable:$true] %s28
      %s30 = sshll.u32 [#allocation6], 4
      %s31 = int_to_ptr.vmem [resolvable:$true] %s30
      %36 = dma.hbm_to_vmem [thread:$0]  %s29, 256, %s31, [#allocation7], 64, 64, 4
    $region9: #{tpu_custom_call.1} parent=1 // pred_fallthru
      _
    // Predicated region
    $region10: #{tpu_custom_call.1} parent=1 // pred_check
      _
    $region11: #{tpu_custom_call.1} parent=1 // pred_check_branch
      %38 = sbr.rel (0) target = $region13
    $region12: #{tpu_custom_call.1} parent=1 // pred_region
      %40 = vsyncadd [#allocation7], 0
      %s41 = sshll.u32 %s2, 4
      %s42 = int_to_ptr.hbm [resolvable:$true] %s41
      %s43 = sshll.u32 [#allocation8], 4
      %s44 = int_to_ptr.vmem [resolvable:$true] %s43
      %49 = dma.hbm_to_vmem [thread:$0]  %s42, 1024, %s44, [#allocation7], 64, 64, 4
    $region13: #{tpu_custom_call.1} parent=1 // pred_fallthru
      _
    // Predicated region
    $region14: #{tpu_custom_call.1} parent=1 // pred_check
      _
    $region15: #{tpu_custom_call.1} parent=1 // pred_check_branch
      %51 = sbr.rel (0) target = $region17
    $region16: #{tpu_custom_call.1} parent=1 // pred_region
      %53 = dma.done [#allocation4], 128
    $region17: #{tpu_custom_call.1} parent=1 // pred_fallthru
      _
    // Predicated region
    $region18: #{tpu_custom_call.1} parent=1 // pred_check
      _
    $region19: #{tpu_custom_call.1} parent=1 // pred_check_branch
      %55 = sbr.rel (0) target = $region21
    $region20: #{tpu_custom_call.1} parent=1 // pred_region
      %57 = dma.done [#allocation7], 256
    $region21: #{tpu_custom_call.1} parent=1 // pred_fallthru
      _
    // Predicated region
    $region22: #{tpu_custom_call.1} parent=1 // pred_check
      _
    $region23: #{tpu_custom_call.1} parent=1 // pred_check_branch
      %59 = sbr.rel (0) target = $region25
    $region24: #{tpu_custom_call.1} parent=1 // pred_region
      %61 = dma.done [#allocation7], 1024
    $region25: #{tpu_custom_call.1} parent=1 // pred_fallthru
      _
    %p63 = scmp.eq.s32.totalorder 0, 0
    // Predicated region
    $region26: #{tpu_custom_call.1} parent=1 // pred_check
      %p64 = pneg %p63
    $region27: #{tpu_custom_call.1} parent=1 // pred_check_branch
      %66 = sbr.rel (%p64) target = $region29
    $region28: #{tpu_custom_call.1} parent=1 // pred_region
      %v67 = vld [vmem:[#allocation3] sm:$0xf]
      %v68 = vld [vmem:[#allocation3 + $0x4] sm:$0xf]
      %v69 = vld [vmem:[#allocation6] sm:$0xf]
      %v70 = vld [vmem:[#allocation6 + $0x4] sm:$0xf]
      %v71 = vld [vmem:[#allocation6 + $0x8] sm:$0xf]
      %v72 = vld [vmem:[#allocation6 + $0xc] sm:$0xf]
      %v75 = vunpack.c.l.b16 %v67
      %v76 = vunpack.c.l.b16 %v68
      %v77 = vpack.c.b16 %v76, %v75
      %v82 = vunpack.c.l.b16 %v69
      %v83 = vunpack.c.l.b16 %v70
      %v84 = vunpack.c.l.b16 %v71
      %v85 = vunpack.c.l.b16 %v72
      %v86 = vpack.c.b16 %v83, %v82
      %v87 = vpack.c.b16 %v85, %v84
      %vm90 = vcmask 261120
      %v92 = vsel %vm90, %v77, 0
      %94 = vmatpush.bf16.msra.mxu0 0
      %95 = vmatpush.bf16.msra.mxu0 0
      %96 = vmatpush.bf16.msra.mxu0 0
      %97 = vmatpush.bf16.msra.mxu0 0
      %98 = vmatpush.bf16.msra.mxu0 0
      %99 = vmatpush.bf16.msra.mxu0 0
      %100 = vmatpush.bf16.msra.mxu0 %v87
      %101 = vmatpush.bf16.msra.mxu0 %v86
      %102 = vmatmul.bf16.gmra.mxu0 %v92
      %v103 = vpop.f32.mrf.mxu0
      %v104 = vadd.f32 0.0, %v103
      %v105 = vpop.f32.mrf.mxu0
      %v106 = vadd.f32 0.0, %v105
      %107 = vdwg.mxu0
      %v108 = vmax.f32 %v104, 0.0
      %v109 = vmax.f32 %v106, 0.0
      %v110 = vpack.c.bf16 %v108, %v108
      %v111 = vpack.c.bf16 %v109, %v109
      %112 = vst [vmem:[#allocation2] sm:$0xf] %v110
      %113 = vst [vmem:[#allocation2 + $0x4] sm:$0xf] %v111
    $region29: #{tpu_custom_call.1} parent=1 // pred_fallthru
      _
    %v114 = vld [vmem:[#allocation2] sm:$0xf]
    %v115 = vld [vmem:[#allocation2 + $0x4] sm:$0xf]
    %v116 = vld [vmem:[#allocation8] sm:$0xf]
    %v117 = vld [vmem:[#allocation8 + $0x4] sm:$0xf]
    %v118 = vld [vmem:[#allocation8 + $0x8] sm:$0xf]
    %v119 = vld [vmem:[#allocation8 + $0xc] sm:$0xf]
    %v120 = vld [vmem:[#allocation8 + $0x10] sm:$0xf]
    %v121 = vld [vmem:[#allocation8 + $0x14] sm:$0xf]
    %v122 = vld [vmem:[#allocation8 + $0x18] sm:$0xf]
    %v123 = vld [vmem:[#allocation8 + $0x1c] sm:$0xf]
    %v124 = vld [vmem:[#allocation8 + $0x20] sm:$0xf]
    %v125 = vld [vmem:[#allocation8 + $0x24] sm:$0xf]
    %v126 = vld [vmem:[#allocation8 + $0x28] sm:$0xf]
    %v127 = vld [vmem:[#allocation8 + $0x2c] sm:$0xf]
    %v128 = vld [vmem:[#allocation8 + $0x30] sm:$0xf]
    %v129 = vld [vmem:[#allocation8 + $0x34] sm:$0xf]
    %v130 = vld [vmem:[#allocation8 + $0x38] sm:$0xf]
    %v131 = vld [vmem:[#allocation8 + $0x3c] sm:$0xf]
    %v134 = vunpack.c.l.b16 %v114
    %v135 = vunpack.c.l.b16 %v115
    %v136 = vpack.c.b16 %v135, %v134
    %v154 = vunpack.c.l.b16 %v116
    %v155 = vunpack.c.l.b16 %v117
    %v156 = vunpack.c.l.b16 %v118
    %v157 = vunpack.c.l.b16 %v119
    %v158 = vunpack.c.l.b16 %v120
    %v159 = vunpack.c.l.b16 %v121
    %v160 = vunpack.c.l.b16 %v122
    %v161 = vunpack.c.l.b16 %v123
    %v162 = vunpack.c.l.b16 %v124
    %v163 = vunpack.c.l.b16 %v125
    %v164 = vunpack.c.l.b16 %v126
    %v165 = vunpack.c.l.b16 %v127
    %v166 = vunpack.c.l.b16 %v128
    %v167 = vunpack.c.l.b16 %v129
    %v168 = vunpack.c.l.b16 %v130
    %v169 = vunpack.c.l.b16 %v131
    %v170 = vpack.c.b16 %v155, %v154
    %v171 = vpack.c.b16 %v157, %v156
    %v172 = vpack.c.b16 %v159, %v158
    %v173 = vpack.c.b16 %v161, %v160
    %v174 = vpack.c.b16 %v163, %v162
    %v175 = vpack.c.b16 %v165, %v164
    %v176 = vpack.c.b16 %v167, %v166
    %v177 = vpack.c.b16 %v169, %v168
    %186 = vmatpush.bf16.msra.mxu0 %v177
    %187 = vmatpush.bf16.msra.mxu0 %v176
    %188 = vmatpush.bf16.msra.mxu0 %v175
    %189 = vmatpush.bf16.msra.mxu0 %v174
    %190 = vmatpush.bf16.msra.mxu0 %v173
    %191 = vmatpush.bf16.msra.mxu0 %v172
    %192 = vmatpush.bf16.msra.mxu0 %v171
    %193 = vmatpush.bf16.msra.mxu0 %v170
    %194 = vmatmul.bf16.gmra.mxu0 %v136
    %v195 = vpop.f32.mrf.mxu0
    %v196 = vadd.f32 0.0, %v195
    %v197 = vpop.f32.mrf.mxu0
    %v198 = vadd.f32 0.0, %v197
    %199 = vdwg.mxu0
    %200 = vst [vmem:[#allocation9] sm:$0xff] %v196
    %201 = vst [vmem:[#allocation9 + $0x8] sm:$0xff] %v198
    // Predicated region
    $region30: #{tpu_custom_call.1} parent=1 // pred_check
      _
    $region31: #{tpu_custom_call.1} parent=1 // pred_check_branch
      %203 = sbr.rel (0) target = $region33
    $region32: #{tpu_custom_call.1} parent=1 // pred_region
      %205 = vsyncadd [#allocation5], 0
      %s206 = sshll.u32 [#allocation9], 4
      %s207 = int_to_ptr.vmem [resolvable:$true] %s206
      %s208 = sshll.u32 %s3, 4
      %s209 = int_to_ptr.hbm [resolvable:$true] %s208
      %214 = dma.vmem_to_hbm [thread:$0]  %s207, 256, %s209, [#allocation5], 128, 128, 8
    $region33: #{tpu_custom_call.1} parent=1 // pred_fallthru
      _
    // Predicated region
    $region34: #{tpu_custom_call.1} parent=1 // pred_check
      _
    $region35: #{tpu_custom_call.1} parent=1 // pred_check_branch
      %216 = sbr.rel (0) target = $region37
    $region36: #{tpu_custom_call.1} parent=1 // pred_region
      %218 = dma.done [#allocation5], 256
    $region37: #{tpu_custom_call.1} parent=1 // pred_fallthru
      _
    %219 = vsyncpa [#allocation4], 1
    %220 = vsyncpa [#allocation7], 1
    %221 = vsyncpa [#allocation5], 1

</llo_original>
